<compile_context>
chip_gen: v7x
topology: tpu7x:2x2x1
jax: 0.10.0
libtpu: 0.0.40
codegen_flags: <defaults>
</compile_context>

<pallas_src>
import math

import jax
import jax.numpy as jnp
from jax import lax
from jax.experimental import pallas as pl
from jax.experimental.pallas import tpu as pltpu


def _round_up(v, m):
    return (v + m - 1) // m * m


def _tpu_vmem_bytes():
    """Physical VMEM per TensorCore; conservative 64 MiB (v7x) fallback."""
    try:
        info = pltpu.get_tpu_info()
        for attr in ("vmem_capacity_bytes", "vmem_bytes", "vmem_size_bytes"):
            v = getattr(info, attr, None)
            if v:
                return int(v)
    except Exception:
        pass
    return 64 << 20


# ----------------------------- Pallas kernels -------------------------------- #

def _mm_bias_kernel(cols_ref, w_ref, b_ref, out_ref):
    # Resident-weight path (no reduction axis).
    # cols: (1, CK, tp) bf16    w: (Cout_pad, CK) bf16 (constant index_map ->
    # DMA'd once, VMEM resident)    b: (Cout_pad, 1) f32
    # out:  (1, Cout_pad, tp) bf16
    acc = jnp.dot(w_ref[...], cols_ref[0], preferred_element_type=jnp.float32)
    out_ref[0] = (acc + b_ref[...]).astype(out_ref.dtype)


def _mm_bias_acc_kernel(cols_ref, w_ref, b_ref, out_ref, acc_ref):
    # CK-tiled reduction path (grid axis 2 = "arbitrary").
    # Bias is folded into the accumulator init so the finalize is a pure
    # cast + store.
    @pl.when(pl.program_id(2) == 0)
    def _():
        acc_ref[...] = jnp.broadcast_to(b_ref[...], acc_ref.shape)

    acc_ref[...] += jnp.dot(w_ref[...], cols_ref[0],
                            preferred_element_type=jnp.float32)

    @pl.when(pl.program_id(2) == pl.num_programs(2) - 1)
    def _():
        out_ref[0] = acc_ref[...].astype(out_ref.dtype)


# ------------------------------ Tiling plan ---------------------------------- #

def _plan_matmul(N, CK, P, Cout, tile_p, tile_k, force_k_path=False):
    """Per-generation tile plan for out[n] = W @ cols[n] + b."""
    vmem_phys = _tpu_vmem_bytes()
    budget = int(0.70 * vmem_phys)          # leave headroom for Mosaic scratch

    # bf16 weight/output sublane packing: pad Cout to a multiple of 16 (skip
    # the pad entirely when it already is, so no post-kernel slice is needed).
    Cout_pad = Cout if Cout % 16 == 0 else _round_up(Cout, 16)

    # Lane tile over the flattened spatial axis (multiple of 128).
    tp = min(max(128, _round_up(tile_p, 128)), _round_up(P, 128))
    # v7x has 2 TensorCores sharded over the parallel grid axes: keep
    # N * num_P_tiles >= 2 so one core never idles (one extra ~0.35us grid
    # step on 1-TC v5e/v6e, negligible).
    if N == 1 and P > 128 and _round_up(P, tp) == tp:
        tp = _round_up((P + 1) // 2, 128)

    bias_bytes = 2 * Cout_pad * 128 * 4       # lane-padded f32, double-buffered

    def fp_full(tp_):
        return (2 * CK * tp_ * 2              # cols bf16, double-buffered
                + 2 * Cout_pad * CK * 2       # resident bf16 weight
                + bias_bytes
                + 2 * Cout_pad * tp_ * 2)     # bf16 output, double-buffered

    def fp_k(tp_, tk_):
        return (2 * tk_ * tp_ * 2
                + 2 * Cout_pad * tk_ * 2
                + bias_bytes
                + 2 * Cout_pad * tp_ * 2
                + Cout_pad * tp_ * 4)         # f32 accumulator scratch

    if (not force_k_path) and fp_full(tp) <= budget:
        plan = dict(use_k=False, tp=tp, tk=CK, CK_pad=CK,
                    P_pad=_round_up(P, tp), Cout_pad=Cout_pad,
                    footprint=fp_full(tp))
    else:
        tk = _round_up(min(max(tile_k, 128), CK), 128)
        while fp_k(tp, tk) > budget and tp > 128:
            tp = max(128, _round_up(tp // 2, 128))
        while fp_k(tp, tk) > budget and tk > 128:
            tk = max(128, _round_up(tk // 2, 128))
        plan = dict(use_k=True, tp=tp, tk=tk, CK_pad=_round_up(CK, tk),
                    P_pad=_round_up(P, tp), Cout_pad=Cout_pad,
                    footprint=fp_k(tp, tk))

    vmem_limit = max(2 * plan["footprint"], 32 << 20)
    vmem_limit = min(vmem_limit, int(0.9 * vmem_phys))
    vmem_limit = max(vmem_limit, plan["footprint"] + (2 << 20))
    plan["vmem_limit"] = int(vmem_limit)
    return plan


# ----------------------------- Pallas wrapper -------------------------------- #

def _pallas_matmul_bias(cols, w, b, plan):
    """out[n] = w @ cols[n] + b.

    cols: (N, CK_pad, P_pad) bf16 (already padded to the plan's shapes),
    w: (Cout, CK) f32, b: (Cout,) f32.  Returns (N, Cout_pad, P_pad) bf16.
    """
    N, CK_pad, P_pad = cols.shape
    Cout, CK = w.shape
    Cout_pad, tp, tk = plan["Cout_pad"], plan["tp"], plan["tk"]

    w_p = w
    if Cout_pad != Cout or CK_pad != CK:
        w_p = jnp.pad(w, ((0, Cout_pad - Cout), (0, CK_pad - CK)))
    w_p = w_p.astype(jnp.bfloat16)
    b_p = b.astype(jnp.float32)
    if Cout_pad != Cout:
        b_p = jnp.pad(b_p, (0, Cout_pad - Cout))
    b_p = b_p.reshape(Cout_pad, 1)

    if not plan["use_k"]:
        # Resident-weight path: grid (N, P tiles), no reduction axis.
        out = pl.pallas_call(
            _mm_bias_kernel,
            out_shape=jax.ShapeDtypeStruct((N, Cout_pad, P_pad), jnp.bfloat16),
            grid_spec=pltpu.PrefetchScalarGridSpec(
                num_scalar_prefetch=0,
                grid=(N, P_pad // tp),
                in_specs=[
                    pl.BlockSpec((1, CK_pad, tp), lambda n, p: (n, 0, p)),
                    pl.BlockSpec((Cout_pad, CK_pad), lambda n, p: (0, 0)),
                    pl.BlockSpec((Cout_pad, 1), lambda n, p: (0, 0)),
                ],
                out_specs=pl.BlockSpec((1, Cout_pad, tp),
                                       lambda n, p: (n, 0, p)),
            ),
            compiler_params=pltpu.CompilerParams(
                dimension_semantics=("parallel", "parallel"),
                vmem_limit_bytes=plan["vmem_limit"],
            ),
        )(cols, w_p, b_p)
    else:
        # CK-tiled reduction path: grid (N, P tiles, CK tiles).
        out = pl.pallas_call(
            _mm_bias_acc_kernel,
            out_shape=jax.ShapeDtypeStruct((N, Cout_pad, P_pad), jnp.bfloat16),
            grid_spec=pltpu.PrefetchScalarGridSpec(
                num_scalar_prefetch=0,
                grid=(N, P_pad // tp, CK_pad // tk),
                in_specs=[
                    pl.BlockSpec((1, tk, tp), lambda n, p, k: (n, k, p)),
                    pl.BlockSpec((Cout_pad, tk), lambda n, p, k: (0, k)),
                    pl.BlockSpec((Cout_pad, 1), lambda n, p, k: (0, 0)),
                ],
                out_specs=pl.BlockSpec((1, Cout_pad, tp),
                                       lambda n, p, k: (n, 0, p)),
                scratch_shapes=[pltpu.VMEM((Cout_pad, tp), jnp.float32)],
            ),
            compiler_params=pltpu.CompilerParams(
                dimension_semantics=("parallel", "parallel", "arbitrary"),
                vmem_limit_bytes=plan["vmem_limit"],
            ),
        )(cols, w_p, b_p)
    return out


# ------------------------------- JAX glue ----------------------------------- #

def _deformable_im2col_modulated(x, offset, mask_sig, kernel_size, stride,
                                 padding, dilation, dg):
    """Modulated bilinear deformable im2col (DCNv2 semantics) -> (N, C*K, P) bf16.

    sigmoid(mask) is folded into the bilinear corner weights so no expanded
    (N, C*K, P) mask is ever materialized; the bf16 cast fuses into the final
    corner-accumulation so the columns hit HBM only once, in bf16.
    """
    # TODO(synk): fuse this per-(group, kernel-pos, pixel) data-dependent
    # bilinear gather into the Pallas matmul kernel (x per deformable group is
    # small enough to keep VMEM-resident); it stays in XLA as 4 large batched
    # take_along_axis gathers for now.
    N, C, H, W = x.shape
    kh, kw = kernel_size
    sh, sw = stride
    ph, pw = padding
    dh, dw = dilation
    K = kh * kw
    Ho, Wo = offset.shape[2], offset.shape[3]
    P = Ho * Wo
    cpg = C // dg

    # Per-group offset channels: 2k = dy, 2k+1 = dx (DCNv2 CUDA layout).
    off = offset.reshape(N, dg, 2 * K, Ho, Wo)
    off_y = off[:, :, 0::2]                                  # (N, dg, K, Ho, Wo)
    off_x = off[:, :, 1::2]
    m = mask_sig.reshape(N, dg, K, Ho, Wo).astype(jnp.float32)

    ky = (jnp.arange(K, dtype=jnp.float32) // kw) * dh       # (K,)
    kx = (jnp.arange(K, dtype=jnp.float32) % kw) * dw
    base_y = jnp.arange(Ho, dtype=jnp.float32) * sh - ph     # (Ho,)
    base_x = jnp.arange(Wo, dtype=jnp.float32) * sw - pw     # (Wo,)

    py = (base_y[None, None, None, :, None]
          + ky[None, None, :, None, None] + off_y)           # (N, dg, K, Ho, Wo)
    px = (base_x[None, None, None, None, :]
          + kx[None, None, :, None, None] + off_x)

    y0 = jnp.floor(py)
    x0 = jnp.floor(px)
    ly = py - y0
    lx = px - x0

    x_g = x.reshape(N, dg, cpg, H * W)
    cols = jnp.zeros((N, dg, cpg, K, P), jnp.float32)
    for dy in (0, 1):
        for dx in (0, 1):
            yy = y0 + dy
            xx = x0 + dx
            wgt = (ly if dy else 1.0 - ly) * (lx if dx else 1.0 - lx)
            # Per-corner zero padding; equivalent to the DCNv2 CUDA kernel's
            # center-validity check + per-corner bounds check.
            valid = (yy >= 0) & (yy < H) & (xx >= 0) & (xx < W)
            wgt = jnp.where(valid, wgt, 0.0) * m              # mask folded here
            yi = jnp.clip(yy, 0, H - 1).astype(jnp.int32)
            xi = jnp.clip(xx, 0, W - 1).astype(jnp.int32)
            idx = (yi * W + xi).reshape(N, dg, 1, K * P)
            g = jnp.take_along_axis(x_g, idx, axis=3)         # (N, dg, cpg, K*P)
            cols = cols + wgt.reshape(N, dg, 1, K, P) * g.reshape(N, dg, cpg, K, P)
    # bf16 emission here (fused) -> halves the column HBM traffic.
    return cols.reshape(N, C * K, P).astype(jnp.bfloat16)


# --------------------------------- Module ----------------------------------- #

class DSP:
    def __init__(self, key, in_channels, out_channels, kernel_size, stride,
                 padding, dilation=1, deformable_groups=1,
                 tile_p=1024, tile_k=512, force_k_path=False):
        def _pair(v):
            return (v, v) if isinstance(v, int) else tuple(v)

        self.in_channels = in_channels
        self.out_channels = out_channels
        self.kernel_size = _pair(kernel_size)
        self.stride = _pair(stride)
        self.padding = _pair(padding)
        self.dilation = _pair(dilation)
        self.deformable_groups = deformable_groups
        self.tile_p = tile_p
        self.tile_k = tile_k
        self.force_k_path = force_k_path

        kh, kw = self.kernel_size
        n = in_channels * kh * kw
        stdv = 1.0 / math.sqrt(n)
        k1, k2 = jax.random.split(key)
        self.weight = jax.random.uniform(
            k1, (out_channels, in_channels, kh, kw), jnp.float32, -stdv, stdv)
        self.bias = jax.random.uniform(
            k2, (out_channels,), jnp.float32, -stdv, stdv)
        # conv_offset_mask is zero-initialized (init_offset()).
        ch = deformable_groups * 3 * kh * kw
        self.om_weight = jnp.zeros((ch, in_channels, kh, kw), jnp.float32)
        self.om_bias = jnp.zeros((ch,), jnp.float32)

    def __call__(self, x):
        N, C, H, W = x.shape
        kh, kw = self.kernel_size
        K = kh * kw
        dg = self.deformable_groups

        # 1) conv_offset_mask: tiny Cout (dg*3*K) -> delegate to XLA conv
        #    (a Pallas matmul would leave the 128/256-wide MXU nearly idle).
        #    Note (matches the PyTorch module): this conv runs with dilation=1,
        #    so as in the original DSP module the output spatial extent only
        #    matches the deformable conv for dilation == 1.
        out_om = lax.conv_general_dilated(
            x, self.om_weight, window_strides=self.stride,
            padding=[(self.padding[0], self.padding[0]),
                     (self.padding[1], self.padding[1])],
            rhs_dilation=(1, 1),
            dimension_numbers=("NCHW", "OIHW", "NCHW"))
        out_om = out_om + self.om_bias.reshape(1, -1, 1, 1)
        Ho, Wo = out_om.shape[2], out_om.shape[3]
        P = Ho * Wo
        CK = C * K

        # 2) chunk -> offset = cat(o1, o2), mask = sigmoid(mask) (compact).
        o1 = out_om[:, :dg * K]
        o2 = out_om[:, dg * K:2 * dg * K]
        mask = jax.nn.sigmoid(out_om[:, 2 * dg * K:])   # (N, dg*K, Ho, Wo)
        offset = jnp.concatenate([o1, o2], axis=1)

        # 3) tile plan (per-generation VMEM budget), then modulated deformable
        #    im2col emitted directly in bf16 (pad only when the plan needs it).
        plan = _plan_matmul(N, CK, P, self.out_channels,
                            self.tile_p, self.tile_k, self.force_k_path)
        cols = _deformable_im2col_modulated(
            x, offset, mask, self.kernel_size, self.stride, self.padding,
            self.dilation, dg)                          # (N, CK, P) bf16
        if plan["CK_pad"] != CK or plan["P_pad"] != P:
            cols = jnp.pad(cols, ((0, 0), (0, plan["CK_pad"] - CK),
                                  (0, plan["P_pad"] - P)))

        # 4) Pallas tiled bf16 matmul + bias, f32 accumulation, bf16 output.
        w = self.weight.reshape(self.out_channels, CK)
        out = _pallas_matmul_bias(cols, w, self.bias, plan)
        # Skip the slice copies whenever the padded dims equal the logical dims.
        if plan["Cout_pad"] != self.out_channels:
            out = out[:, :self.out_channels]
        if plan["P_pad"] != P:
            out = out[:, :, :P]
        return out.reshape(N, self.out_channels, Ho, Wo)


# ---------------------------------- Main ------------------------------------- #

if __name__ == "__main__":
    key = jax.random.PRNGKey(0)
    k_param, k_x = jax.random.split(key)

    N, C_in, C_out, H, W = 2, 16, 24, 16, 16
    kernel_size, stride, padding, dilation, dg = 3, 1, 1, 1, 2

    # Default plan: resident-weight path (weight << VMEM), grid (N, P tiles).
    dsp = DSP(k_param, C_in, C_out, kernel_size, stride, padding,
              dilation=dilation, deformable_groups=dg)
    x = jax.random.normal(k_x, (N, C_in, H, W), jnp.float32)

    fwd = jax.jit(dsp.__call__)
    y = fwd(x)
    jax.block_until_ready(y)

    # Sanity check: with zero-initialized conv_offset_mask, offset == 0 and
    # mask == sigmoid(0) == 0.5, so output == 0.5 * conv(x, W) + b.  Compare
    # against a bf16 conv (same MXU numerics as the Pallas kernel).
    ref = lax.conv_general_dilated(
        x.astype(jnp.bfloat16), dsp.weight.astype(jnp.bfloat16),
        window_strides=dsp.stride,
        padding=[(dsp.padding[0], dsp.padding[0]),
                 (dsp.padding[1], dsp.padding[1])],
        rhs_dilation=dsp.dilation,
        dimension_numbers=("NCHW", "OIHW", "NCHW"),
        preferred_element_type=jnp.float32)
    ref = 0.5 * ref + dsp.bias.reshape(1, -1, 1, 1)
    if not bool(jnp.allclose(y.astype(jnp.float32), ref, rtol=2e-2, atol=2e-2)):
        raise AssertionError("Pallas DSP output mismatch vs reference")

    # Also exercise the CK-tiled reduction path (used when the weight does not
    # fit the VMEM budget) with small tiles, and check it matches.
    dsp_k = DSP(k_param, C_in, C_out, kernel_size, stride, padding,
                dilation=dilation, deformable_groups=dg,
                tile_p=128, tile_k=128, force_k_path=True)
    y2 = jax.jit(dsp_k.__call__)(x)
    jax.block_until_ready(y2)
    if not bool(jnp.allclose(y.astype(jnp.float32), y2.astype(jnp.float32),
                             rtol=2e-2, atol=2e-2)):
        raise AssertionError("Resident-weight and CK-tiled paths disagree")

    print("KERNEL_OK")
</pallas_src>

<mosaic_0001>
module attributes {stable_mosaic.version = 11 : i64} {
  func.func @_mm_bias_kernel(%arg0: i32, %arg1: i32, %arg2: memref<1x144x256xbf16, #tpu.memory_space<vmem>>, %arg3: memref<32x144xbf16, #tpu.memory_space<vmem>>, %arg4: memref<32x1xf32, #tpu.memory_space<vmem>>, %arg5: memref<1x32x256xbf16, #tpu.memory_space<vmem>>) attributes {dimension_semantics = [#tpu.dimension_semantics<parallel>, #tpu.dimension_semantics<parallel>], iteration_bounds = array<i64: 2, 1>, scalar_prefetch = 0 : i64, scratch_operands = 0 : i64, tpu.core_type = #tpu.core_type<tc>, window_params = [{transform_indices = @transform_0, window_bounds = array<i64: 1, 144, 256>}, {pipeline_mode = #tpu.pipeline_mode<synchronous>, transform_indices = @transform_1, window_bounds = array<i64: 32, 144>}, {pipeline_mode = #tpu.pipeline_mode<synchronous>, transform_indices = @transform_2, window_bounds = array<i64: 32, 1>}, {transform_indices = @transform_3, window_bounds = array<i64: 1, 32, 256>}]} {
    %c0 = arith.constant 0 : index
    %c0_0 = arith.constant 0 : index
    %0 = vector.load %arg3[%c0, %c0_0] : memref<32x144xbf16, #tpu.memory_space<vmem>>, vector<32x144xbf16>
    %c0_1 = arith.constant 0 : index
    %c0_2 = arith.constant 0 : index
    %c0_3 = arith.constant 0 : index
    %1 = vector.load %arg2[%c0_1, %c0_2, %c0_3] : memref<1x144x256xbf16, #tpu.memory_space<vmem>>, vector<1x144x256xbf16>
    %2 = vector.shape_cast %1 : vector<1x144x256xbf16> to vector<144x256xbf16>
    %cst = arith.constant dense<0.000000e+00> : vector<32x256xf32>
    %3 = tpu.matmul %0, %2, %cst {dimension_numbers = #tpu.dot_dimension_numbers<[1], [0], [0], [1], [0, 0, 1, 1], [], []>} : vector<32x144xbf16>, vector<144x256xbf16>, vector<32x256xf32> -> vector<32x256xf32>
    %c0_4 = arith.constant 0 : index
    %c0_5 = arith.constant 0 : index
    %4 = vector.load %arg4[%c0_4, %c0_5] : memref<32x1xf32, #tpu.memory_space<vmem>>, vector<32x1xf32>
    %5 = vector.broadcast %4 : vector<32x1xf32> to vector<32x256xf32>
    %6 = arith.addf %3, %5 : vector<32x256xf32>
    %7 = arith.truncf %6 : vector<32x256xf32> to vector<32x256xbf16>
    %c0_6 = arith.constant 0 : index
    %c0_7 = arith.constant 0 : index
    %c0_8 = arith.constant 0 : index
    %8 = vector.load %arg5[%c0_6, %c0_7, %c0_8] : memref<1x32x256xbf16, #tpu.memory_space<vmem>>, vector<1x32x256xbf16>
    %9 = vector.shape_cast %8 : vector<1x32x256xbf16> to vector<32x256xbf16>
    %10 = vector.shape_cast %7 : vector<32x256xbf16> to vector<1x32x256xbf16>
    tpu.vector_store %arg5[%c0_6, %c0_7, %c0_8], %10 {strides = array<i32>} : memref<1x32x256xbf16, #tpu.memory_space<vmem>>, vector<1x32x256xbf16>,
    return
  }
  func.func @transform_0(%arg0: i32, %arg1: i32) -> (i32, i32, i32) {
    %c0_i32 = arith.constant 0 : i32
    %c0_i32_0 = arith.constant 0 : i32
    return %arg0, %c0_i32, %arg1 : i32, i32, i32
  }
  func.func @transform_1(%arg0: i32, %arg1: i32) -> (i32, i32) {
    %c0_i32 = arith.constant 0 : i32
    %c0_i32_0 = arith.constant 0 : i32
    %c0_i32_1 = arith.constant 0 : i32
    return %c0_i32, %c0_i32_0 : i32, i32
  }
  func.func @transform_2(%arg0: i32, %arg1: i32) -> (i32, i32) {
    %c0_i32 = arith.constant 0 : i32
    %c0_i32_0 = arith.constant 0 : i32
    %c0_i32_1 = arith.constant 0 : i32
    return %c0_i32, %c0_i32_0 : i32, i32
  }
  func.func @transform_3(%arg0: i32, %arg1: i32) -> (i32, i32, i32) {
    %c0_i32 = arith.constant 0 : i32
    %c0_i32_0 = arith.constant 0 : i32
    return %arg0, %c0_i32, %arg1 : i32, i32, i32
  }
}

</mosaic_0001>

<llo_original>
// kernel: a_call__.1
$region0: #{a_call__.1}
  #allocation0 [shape = 'u32[]', space=smem, size = 0x4, offset = 0x4, fixed_abs, tag = 'smem constant byte address 0x4 - core index']
  #allocation1 [shape = 'u32[144,128]{1,0:T(1,128)}', space=vmem, size = 0x12000, scoped, tag = 'internal scratch']
  %s0 = inlined_call_operand.vmem [shape: bf16[2,144,256], index: 0, kind: input, shape index: {}]
  %s1 = inlined_call_operand.vmem [shape: bf16[32,144], index: 1, kind: input, shape index: {}]
  %s2 = inlined_call_operand.vmem [shape: f32[32,1], index: 2, kind: input, shape index: {}]
  %s3 = inlined_call_operand.vmem [shape: bf16[2,32,256], index: 3, kind: output, shape index: {}]
  %s4 = sld [smem:[#allocation0]]
  $region45: #{a_call__.1} parent=0
    _
  %s6 = ssub.s32 1, %s4
  %s7 = scalar_select 0, %s6, %s4
  loop: start=0, step=1, limit=4
  $region2: #{a_call__.1} parent=0 // loop_pre_header
    _
  $region3: #{a_call__.1} parent=0 // loop_header
    %s9 = sphi 0, %s13
    %p10 = scmp.ge.s32.totalorder %s9, 4
    %s16 = sphi 0, %s28
    %s17 = sphi 0, %s24
    %s18 = sphi 0, %s16
    %s19 = sphi 0, %s17
    %s20 = sphi 0, %s18
    %s21 = sphi 0, %s19
    %s33 = sphi 0, %s35
    %s36 = sphi 0, %s33
    %s37 = sphi 0, %s36
    %s53 = sphi 0, %s37
    %s57 = sphi 0, %s57
    %s59 = sphi 0, %s57
    %s60 = sphi 0, %s59
    %s74 = sphi 0, %s60
    %s78 = sphi 0, %s78
    %s80 = sphi 0, %s78
    %s81 = sphi 0, %s80
    %s95 = sphi 0, %s81
    %s103 = sphi 0, %s105
    %s106 = sphi 0, %s103
    %s107 = sphi 0, %s106
    %s123 = sphi 0, %s107
  $region4: #{a_call__.1} parent=0 // loop_header_branch
    %12 = sbr.rel (%p10) target = $region8
  $region5: #{a_call__.1} parent=0 // loop_body
    %s14 = ssub.s32 %s9, 1
    %s15 = ssub.s32 %s9, 2
    %s22 = sadd.s32 1, %s17
    %p23 = scmp.ge.s32.totalorder %s22, 1
    %s24 = scalar_select %p23, 0, %s22
    %s25 = sadd.s32 1, %s16
    %s26 = scalar_select %p23, %s25, %s16
    %p27 = scmp.ge.s32.totalorder %s26, 2
    %s28 = scalar_select %p27, 0, %s26
    %s29 = ssub.s32 %s16, %s28
    %s30 = ssub.s32 %s17, %s24
    %s31 = sor.u32 %s29, %s30
    %p32 = scmp.eq.s32.totalorder %s31, 0
    %s34 = sadd.s32 %s33, 1
    %s35 = scalar_select %p32, %s33, %s34
    %p38 = pneg %p32
    %p39 = scmp.eq.s32.totalorder %s9, 1
    %p40 = por %p38, %p39
    %p41 = scmp.ne.s32.totalorder %s33, %s36
    %p42 = scmp.eq.s32.totalorder %s9, 0
    %p43 = por %p41, %p42
    %p44 = scmp.ne.s32.totalorder %s33, %s36
    %p45 = scmp.eq.s32.totalorder %s14, 1
    %p46 = por %p44, %p45
    %p47 = scmp.ne.s32.totalorder %s36, %s37
    %p48 = scmp.eq.s32.totalorder %s14, 0
    %p49 = por %p47, %p48
    %p50 = scmp.ne.s32.totalorder %s36, %s37
    %p51 = scmp.eq.s32.totalorder %s15, 1
    %p52 = por %p50, %p51
    %p54 = scmp.ne.s32.totalorder %s37, %s53
    %p55 = scmp.eq.s32.totalorder %s15, 0
    %p56 = por %p54, %p55
    %s58 = sadd.s32 %s57, 1
    %p61 = scmp.eq.s32.totalorder %s9, 1
    %p62 = scmp.ne.s32.totalorder %s57, %s59
    %p63 = scmp.eq.s32.totalorder %s9, 0
    %p64 = por %p62, %p63
    %p65 = scmp.ne.s32.totalorder %s57, %s59
    %p66 = scmp.eq.s32.totalorder %s14, 1
    %p67 = por %p65, %p66
    %p68 = scmp.ne.s32.totalorder %s59, %s60
    %p69 = scmp.eq.s32.totalorder %s14, 0
    %p70 = por %p68, %p69
    %p71 = scmp.ne.s32.totalorder %s59, %s60
    %p72 = scmp.eq.s32.totalorder %s15, 1
    %p73 = por %p71, %p72
    %p75 = scmp.ne.s32.totalorder %s60, %s74
    %p76 = scmp.eq.s32.totalorder %s15, 0
    %p77 = por %p75, %p76
    %s79 = sadd.s32 %s78, 1
    %p82 = scmp.eq.s32.totalorder %s9, 1
    %p83 = scmp.ne.s32.totalorder %s78, %s80
    %p84 = scmp.eq.s32.totalorder %s9, 0
    %p85 = por %p83, %p84
    %p86 = scmp.ne.s32.totalorder %s78, %s80
    %p87 = scmp.eq.s32.totalorder %s14, 1
    %p88 = por %p86, %p87
    %p89 = scmp.ne.s32.totalorder %s80, %s81
    %p90 = scmp.eq.s32.totalorder %s14, 0
    %p91 = por %p89, %p90
    %p92 = scmp.ne.s32.totalorder %s80, %s81
    %p93 = scmp.eq.s32.totalorder %s15, 1
    %p94 = por %p92, %p93
    %p96 = scmp.ne.s32.totalorder %s81, %s95
    %p97 = scmp.eq.s32.totalorder %s15, 0
    %p98 = por %p96, %p97
    %s99 = ssub.s32 %s16, %s28
    %s100 = ssub.s32 %s17, %s24
    %s101 = sor.u32 %s99, %s100
    %p102 = scmp.eq.s32.totalorder %s101, 0
    %s104 = sadd.s32 %s103, 1
    %s105 = scalar_select %p102, %s103, %s104
    %p108 = pneg %p102
    %p109 = scmp.eq.s32.totalorder %s9, 1
    %p110 = por %p108, %p109
    %p111 = scmp.ne.s32.totalorder %s103, %s106
    %p112 = scmp.eq.s32.totalorder %s9, 0
    %p113 = por %p111, %p112
    %p114 = scmp.ne.s32.totalorder %s103, %s106
    %p115 = scmp.eq.s32.totalorder %s14, 1
    %p116 = por %p114, %p115
    %p117 = scmp.ne.s32.totalorder %s106, %s107
    %p118 = scmp.eq.s32.totalorder %s14, 0
    %p119 = por %p117, %p118
    %p120 = scmp.ne.s32.totalorder %s106, %s107
    %p121 = scmp.eq.s32.totalorder %s15, 1
    %p122 = por %p120, %p121
    %p124 = scmp.ne.s32.totalorder %s107, %s123
    %p125 = scmp.eq.s32.totalorder %s15, 0
    %p126 = por %p124, %p125
    %p127 = scmp.le.s32.totalorder 1, %s9
    %p128 = scmp.lt.s32.totalorder %s9, 3
    %p129 = pnand %p127, %p128
    %p130 = pneg %p129
    // Predicated region
    $region9: #{a_call__.1} parent=5 // pred_check
      _
    $region10: #{a_call__.1} parent=5 // pred_check_branch
      %132 = sbr.rel (%p129) target = $region12
    $region11: #{a_call__.1} parent=5 // pred_region
      %s133 = ssub.s32 %s9, 1
      // Predicated region
      $region13: #{a_call__.1} parent=11 // pred_check
        %p134 = pneg %p70
      $region14: #{a_call__.1} parent=11 // pred_check_branch
        %136 = sbr.rel (%p134) target = $region16
      $region15: #{a_call__.1} parent=11 // pred_region
        _
      $region16: #{a_call__.1} parent=11 // pred_fallthru
        _
      // Predicated region
      $region17: #{a_call__.1} parent=11 // pred_check
        %p137 = pneg %p91
      $region18: #{a_call__.1} parent=11 // pred_check_branch
        %139 = sbr.rel (%p137) target = $region20
      $region19: #{a_call__.1} parent=11 // pred_region
        _
      $region20: #{a_call__.1} parent=11 // pred_fallthru
        _
    $region12: #{a_call__.1} parent=5 // pred_fallthru
      _
    %p140 = scmp.lt.s32.totalorder %s9, 2
    // Predicated region
    $region21: #{a_call__.1} parent=5 // pred_check
      %p141 = pneg %p140
    $region22: #{a_call__.1} parent=5 // pred_check_branch
      %143 = sbr.rel (%p141) target = $region24
    $region23: #{a_call__.1} parent=5 // pred_region
      // Predicated region
      $region25: #{a_call__.1} parent=23 // pred_check
        %p144 = pneg %p43
      $region26: #{a_call__.1} parent=23 // pred_check_branch
        %146 = sbr.rel (%p144) target = $region28
      $region27: #{a_call__.1} parent=23 // pred_region
        %s147 = smul.u32 2, %s17
        %p148 = scmp.lt.s32.totalorder %s16, 1
        %s149 = scalar_select %p148, %s16, 1
        %p150 = scmp.lt.s32.totalorder %s147, 1
        %s151 = scalar_select %p150, %s147, 1
        %s152 = smul.addr %s149, 36
        %s153 = sadd.s32 %s151, %s152
        %s154 = smul.addr %s153, 4
        %s155 = scalar_lea.vmem %s0, %s154
        %s156 = smul.u32 2, %s17
      $region28: #{a_call__.1} parent=23 // pred_fallthru
        _
    $region24: #{a_call__.1} parent=5 // pred_fallthru
      _
    %p157 = scmp.le.s32.totalorder 1, %s9
    %p158 = scmp.lt.s32.totalorder %s9, 3
    %p159 = pnand %p157, %p158
    %p160 = pneg %p159
    // Predicated region
    $region29: #{a_call__.1} parent=5 // pred_check
      _
    $region30: #{a_call__.1} parent=5 // pred_check_branch
      %162 = sbr.rel (%p159) target = $region32
    $region31: #{a_call__.1} parent=5 // pred_region
      %s163 = ssub.s32 %s9, 1
      %s164 = smul.u32 2, %s19
      %p165 = scmp.lt.s32.totalorder %s18, 1
      %s166 = scalar_select %p165, %s18, 1
      %p167 = scmp.lt.s32.totalorder %s164, 1
      %s168 = scalar_select %p167, %s164, 1
      %s169 = smul.addr %s166, 36
      %s170 = sadd.s32 %s168, %s169
      %s171 = smul.addr %s170, 4
      %s172 = scalar_lea.vmem %s0, %s171
      %p173 = pneg %p49
      %p174 = pneg %p46
      %p175 = pneg %p70
      %p176 = pneg %p67
      %p177 = pneg %p91
      %p178 = pneg %p88
      %p179 = pneg %p119
      %p180 = pneg %p116
      %s181 = smul.u32 2, %s19
      %p182 = scmp.lt.s32.totalorder %s18, 1
      %s183 = scalar_select %p182, %s18, 1
      %p184 = scmp.lt.s32.totalorder %s181, 1
      %s185 = scalar_select %p184, %s181, 1
      %s186 = smul.addr %s183, 8
      %s187 = sadd.s32 %s185, %s186
      %s188 = smul.addr %s187, 4
      %s189 = scalar_lea.vmem %s3, %s188
      %s190 = smul.u32 2, %s19
      %p191 = scmp.lt.s32.totalorder %s18, 1
      %s192 = scalar_select %p191, %s18, 1
      %p193 = scmp.lt.s32.totalorder %s190, 1
      %s194 = scalar_select %p193, %s190, 1
      %s195 = smul.addr %s192, 36
      %s196 = sadd.s32 %s194, %s195
      %s197 = smul.addr %s196, 4
      %s198 = scalar_lea.vmem %s0, %s197
      %s199 = smul.u32 2, %s19
      %s200 = smul.u32 2, %s19
      %p201 = scmp.lt.s32.totalorder %s18, 1
      %s202 = scalar_select %p201, %s18, 1
      %p203 = scmp.lt.s32.totalorder %s200, 1
      %s204 = scalar_select %p203, %s200, 1
      %s205 = smul.addr %s202, 8
      %s206 = sadd.s32 %s204, %s205
      %s207 = smul.addr %s206, 4
      %s208 = scalar_lea.vmem %s3, %s207
      %s209 = smul.u32 2, %s19
      %v211 = vld [vmem:[%s1] sm:$0xff]
      %v212 = vld [vmem:[%s1 + $0x8] sm:$0xff]
      %v213 = vld [vmem:[%s1 + $0x10] sm:$0xff]
      %v214 = vld [vmem:[%s1 + $0x18] sm:$0xff]
      %v215 = vld [vmem:[%s198] sm:$0xff]
      %v216 = vld [vmem:[%s198 + $0x8] sm:$0xff]
      %v217 = vld [vmem:[%s198 + $0x10] sm:$0xff]
      %v218 = vld [vmem:[%s198 + $0x18] sm:$0xff]
      %v219 = vld [vmem:[%s198 + $0x20] sm:$0xff]
      %v220 = vld [vmem:[%s198 + $0x28] sm:$0xff]
      %v221 = vld [vmem:[%s198 + $0x30] sm:$0xff]
      %v222 = vld [vmem:[%s198 + $0x38] sm:$0xff]
      %v223 = vld [vmem:[%s198 + $0x40] sm:$0xff]
      %v224 = vld [vmem:[%s198 + $0x48] sm:$0xff]
      %v225 = vld [vmem:[%s198 + $0x50] sm:$0xff]
      %v226 = vld [vmem:[%s198 + $0x58] sm:$0xff]
      %v227 = vld [vmem:[%s198 + $0x60] sm:$0xff]
      %v228 = vld [vmem:[%s198 + $0x68] sm:$0xff]
      %v229 = vld [vmem:[%s198 + $0x70] sm:$0xff]
      %v230 = vld [vmem:[%s198 + $0x78] sm:$0xff]
      %v231 = vld [vmem:[%s198 + $0x80] sm:$0xff]
      %v232 = vld [vmem:[%s198 + $0x88] sm:$0xff]
      %v233 = vld [vmem:[%s2] sm:$0xff]
      %v234 = vld [vmem:[%s2 + $0x8] sm:$0xff]
      %v235 = vld [vmem:[%s2 + $0x10] sm:$0xff]
      %v236 = vld [vmem:[%s2 + $0x18] sm:$0xff]
      %238 = vset.pattern.permute.xlu0 0
      %239 = vperm.xlu0 %238, %v233
      %v240 = vpop.permute.xlu0 %239
      %243 = vset.pattern.permute.xlu0 0
      %244 = vperm.xlu0 %243, %v234
      %v245 = vpop.permute.xlu0 %244
      %248 = vset.pattern.permute.xlu0 0
      %249 = vperm.xlu0 %248, %v235
      %v250 = vpop.permute.xlu0 %249
      %253 = vset.pattern.permute.xlu0 0
      %254 = vperm.xlu0 %253, %v236
      %v255 = vpop.permute.xlu0 %254
      %v261 = vunpack.c.l.b16 %v211
      %v262 = vunpack.c.h.b16 %v211
      %v263 = vunpack.c.l.b16 %v212
      %v264 = vunpack.c.h.b16 %v212
      %v265 = vunpack.c.l.b16 %v213
      %v266 = vunpack.c.h.b16 %v213
      %v267 = vunpack.c.l.b16 %v214
      %v268 = vunpack.c.h.b16 %v214
      %v269 = vpack.c.b16 %v263, %v261
      %v270 = vpack.c.b16 %v264, %v262
      %v271 = vpack.c.b16 %v267, %v265
      %v272 = vpack.c.b16 %v268, %v266
      %v293 = vunpack.c.l.b16 %v215
      %v294 = vunpack.c.h.b16 %v215
      %v295 = vunpack.c.l.b16 %v216
      %v296 = vunpack.c.h.b16 %v216
      %v297 = vunpack.c.l.b16 %v217
      %v298 = vunpack.c.h.b16 %v217
      %v299 = vunpack.c.l.b16 %v218
      %v300 = vunpack.c.h.b16 %v218
      %v301 = vunpack.c.l.b16 %v219
      %v302 = vunpack.c.h.b16 %v219
      %v303 = vunpack.c.l.b16 %v220
      %v304 = vunpack.c.h.b16 %v220
      %v305 = vunpack.c.l.b16 %v221
      %v306 = vunpack.c.h.b16 %v221
      %v307 = vunpack.c.l.b16 %v222
      %v308 = vunpack.c.h.b16 %v222
      %v309 = vunpack.c.l.b16 %v223
      %v310 = vunpack.c.h.b16 %v223
      %v311 = vunpack.c.l.b16 %v224
      %v312 = vunpack.c.h.b16 %v224
      %v313 = vunpack.c.l.b16 %v225
      %v314 = vunpack.c.h.b16 %v225
      %v315 = vunpack.c.l.b16 %v226
      %v316 = vunpack.c.h.b16 %v226
      %v317 = vunpack.c.l.b16 %v227
      %v318 = vunpack.c.h.b16 %v227
      %v319 = vunpack.c.l.b16 %v228
      %v320 = vunpack.c.h.b16 %v228
      %v321 = vunpack.c.l.b16 %v229
      %v322 = vunpack.c.h.b16 %v229
      %v323 = vunpack.c.l.b16 %v230
      %v324 = vunpack.c.h.b16 %v230
      %v325 = vunpack.c.l.b16 %v231
      %v326 = vunpack.c.h.b16 %v231
      %v327 = vunpack.c.l.b16 %v232
      %v328 = vunpack.c.h.b16 %v232
      %v329 = vpack.c.b16 %v295, %v293
      %v330 = vpack.c.b16 %v296, %v294
      %v331 = vpack.c.b16 %v299, %v297
      %v332 = vpack.c.b16 %v300, %v298
      %v333 = vpack.c.b16 %v303, %v301
      %v334 = vpack.c.b16 %v304, %v302
      %v335 = vpack.c.b16 %v307, %v305
      %v336 = vpack.c.b16 %v308, %v306
      %v337 = vpack.c.b16 %v311, %v309
      %v338 = vpack.c.b16 %v312, %v310
      %v339 = vpack.c.b16 %v315, %v313
      %v340 = vpack.c.b16 %v316, %v314
      %v341 = vpack.c.b16 %v319, %v317
      %v342 = vpack.c.b16 %v320, %v318
      %v343 = vpack.c.b16 %v323, %v321
      %v344 = vpack.c.b16 %v324, %v322
      %v345 = vpack.c.b16 %v327, %v325
      %v346 = vpack.c.b16 %v328, %v326
      %vm365 = vcmask 130048
      %v367 = vsel %vm365, %v270, 0
      %v370 = vsel %vm365, %v272, 0
      %372 = vmatprep.subr.bf16.mxu0 %v330
      %373 = vmatpush1.bf16.msra.mxu0 %v329
      %374 = vmatprep.subr.bf16.mxu0 %v332
      %375 = vmatpush1.bf16.msra.mxu0 %v331
      %376 = vmatprep.subr.bf16.mxu0 %v334
      %377 = vmatpush1.bf16.msra.mxu0 %v333
      %378 = vmatprep.subr.bf16.mxu0 %v336
      %379 = vmatpush1.bf16.msra.mxu0 %v335
      %380 = vmatprep.subr.bf16.mxu0 %v338
      %381 = vmatpush1.bf16.msra.mxu0 %v337
      %382 = vmatprep.subr.bf16.mxu0 %v340
      %383 = vmatpush1.bf16.msra.mxu0 %v339
      %384 = vmatprep.subr.bf16.mxu0 %v342
      %385 = vmatpush1.bf16.msra.mxu0 %v341
      %386 = vmatprep.subr.bf16.mxu0 %v344
      %387 = vmatpush1.bf16.msra.mxu0 %v343
      %388 = vmatprep.subr.bf16.mxu0 %v346
      %389 = vmatpush1.bf16.msra.mxu0 %v345
      %390 = vmatprep.subr.bf16.mxu0 0
      %391 = vmatpush1.bf16.msra.mxu0 0
      %392 = vmatprep.subr.bf16.mxu0 0
      %393 = vmatpush1.bf16.msra.mxu0 0
      %394 = vmatprep.subr.bf16.mxu0 0
      %395 = vmatpush1.bf16.msra.mxu0 0
      %396 = vmatprep.subr.bf16.mxu0 0
      %397 = vmatpush1.bf16.msra.mxu0 0
      %398 = vmatprep.subr.bf16.mxu0 0
      %399 = vmatpush1.bf16.msra.mxu0 0
      %400 = vmatprep.subr.bf16.mxu0 0
      %401 = vmatpush1.bf16.msra.mxu0 0
      %402 = vmatprep.subr.bf16.mxu0 0
      %403 = vmatpush1.bf16.msra.mxu0 0
      %404 = vmatprep.mubr.bf16.mxu0 %v367
      %405 = vmatmul.mubr.bf16.gmra.mrb[0].mxu0 %v269
      %v406 = vpop.f32.mrb[0].mxu0
      %v407 = vadd.f32 %v240, %v406
      %v408 = vpop.f32.mrb[0].mxu0
      %v409 = vadd.f32 %v240, %v408
      %v410 = vpop.f32.mrb[0].mxu0
      %v411 = vadd.f32 %v245, %v410
      %v412 = vpop.f32.mrb[0].mxu0
      %v413 = vadd.f32 %v245, %v412
      %414 = vmatprep.mubr.bf16.mxu0 %v370
      %415 = vmatmul.mubr.bf16.gmra.mrb[0].mxu0 %v271
      %v416 = vpop.f32.mrb[0].mxu0
      %v417 = vadd.f32 %v250, %v416
      %v418 = vpop.f32.mrb[0].mxu0
      %v419 = vadd.f32 %v250, %v418
      %v420 = vpop.f32.mrb[0].mxu0
      %v421 = vadd.f32 %v255, %v420
      %v422 = vpop.f32.mrb[0].mxu0
      %v423 = vadd.f32 %v255, %v422
      %424 = vdwg.mxu0
      %v425 = vpack.c.bf16 %v411, %v407
      %v426 = vpack.c.bf16 %v413, %v409
      %v427 = vpack.c.bf16 %v421, %v417
      %v428 = vpack.c.bf16 %v423, %v419
      %v433 = vunpack.c.l.b16 %v425
      %v434 = vunpack.c.l.b16 %v426
      %v435 = vunpack.c.h.b16 %v425
      %v436 = vunpack.c.h.b16 %v426
      %v437 = vunpack.c.l.b16 %v427
      %v438 = vunpack.c.l.b16 %v428
      %v439 = vunpack.c.h.b16 %v427
      %v440 = vunpack.c.h.b16 %v428
      %v441 = vpack.c.b16 %v434, %v433
      %v442 = vpack.c.b16 %v436, %v435
      %v443 = vpack.c.b16 %v438, %v437
      %v444 = vpack.c.b16 %v440, %v439
      %449 = vst [vmem:[%s208] sm:$0xff] %v441
      %450 = vst [vmem:[%s208 + $0x8] sm:$0xff] %v442
      %451 = vst [vmem:[%s208 + $0x10] sm:$0xff] %v443
      %452 = vst [vmem:[%s208 + $0x18] sm:$0xff] %v444
      %s453 = smul.u32 2, %s19
      %p454 = scmp.lt.s32.totalorder %s18, 1
      %s455 = scalar_select %p454, %s18, 1
      %p456 = scmp.lt.s32.totalorder %s453, 1
      %s457 = scalar_select %p456, %s453, 1
      %s458 = smul.addr %s455, 8
      %s459 = sadd.s32 %s457, %s458
      %s460 = smul.addr %s459, 4
      %s461 = scalar_lea.vmem %s3, %s460
      // Predicated region
      $region33: #{a_call__.1} parent=31 // pred_check
        %p462 = pneg %p116
      $region34: #{a_call__.1} parent=31 // pred_check_branch
        %464 = sbr.rel (%p462) target = $region36
      $region35: #{a_call__.1} parent=31 // pred_region
        %s465 = smul.u32 2, %s19
      $region36: #{a_call__.1} parent=31 // pred_fallthru
        _
    $region32: #{a_call__.1} parent=5 // pred_fallthru
      _
    %p466 = scmp.le.s32.totalorder 2, %s9
    // Predicated region
    $region37: #{a_call__.1} parent=5 // pred_check
      %p467 = pneg %p466
    $region38: #{a_call__.1} parent=5 // pred_check_branch
      %469 = sbr.rel (%p467) target = $region40
    $region39: #{a_call__.1} parent=5 // pred_region
      %s470 = ssub.s32 %s9, 2
      // Predicated region
      $region41: #{a_call__.1} parent=39 // pred_check
        %p471 = pneg %p122
      $region42: #{a_call__.1} parent=39 // pred_check_branch
        %473 = sbr.rel (%p471) target = $region44
      $region43: #{a_call__.1} parent=39 // pred_region
        %s474 = smul.u32 2, %s21
        %p475 = scmp.lt.s32.totalorder %s20, 1
        %s476 = scalar_select %p475, %s20, 1
        %p477 = scmp.lt.s32.totalorder %s474, 1
        %s478 = scalar_select %p477, %s474, 1
        %s479 = smul.addr %s476, 8
        %s480 = sadd.s32 %s478, %s479
        %s481 = smul.addr %s480, 4
        %s482 = scalar_lea.vmem %s3, %s481
      $region44: #{a_call__.1} parent=39 // pred_fallthru
        _
    $region40: #{a_call__.1} parent=5 // pred_fallthru
      _
  $region6: #{a_call__.1} parent=0 // loop_footer
    %s13 = sadd.s32 1, %s9
  $region7: #{a_call__.1} parent=0 // loop_footer_branch
    %8 = sbr.rel target = $region3
  $region8: #{a_call__.1} parent=0 // loop_exit
    _

</llo_original>
